<compile_context>
chip_gen: v5e
topology: v5e:2x2
jax: 0.10.0
libtpu: 0.0.40
codegen_flags: <defaults>
</compile_context>

<pallas_src>
import functools
import math

import jax
import jax.numpy as jnp
from jax.experimental import pallas as pl
from jax.experimental.pallas import tpu as pltpu

_INT32_MIN = -(2 ** 31)
_INT32_MAX = 2 ** 31 - 1


def _compute_mask(s, *, drop_num, out_dtype):
    """s: (bt, hw) f32 channel sums -> (bt, hw) mask (0 on dropped peaks)."""
    bt, hw = s.shape

    # Monotone int32 key for f32 ordering: key(a) < key(b) <=> a < b.
    bits = pltpu.bitcast(s, jnp.int32)
    key = jnp.where(bits < 0, bits ^ jnp.int32(0x7FFFFFFF), bits)

    k = jnp.int32(drop_num)

    # ---- Binary search (per row) for the key T of the drop_num-th largest.
    lo0 = jnp.full((bt, 1), _INT32_MIN, jnp.int32)
    hi0 = jnp.full((bt, 1), _INT32_MAX, jnp.int32)

    def search_body(_, carry):
        lo, hi = carry
        # Overflow-safe floor((lo+hi)/2) via arithmetic shifts.
        mid = (lo >> 1) + (hi >> 1) + (lo & hi & jnp.int32(1))
        cnt = jnp.sum((key > mid).astype(jnp.int32), axis=-1, keepdims=True)
        go_up = cnt >= k
        lo = jnp.where(go_up, mid + 1, lo)
        hi = jnp.where(go_up, hi, mid)
        return lo, hi

    _, thresh = jax.lax.fori_loop(0, 32, search_body, (lo0, hi0))  # (bt, 1)

    # Drop all strictly-greater elements, then the first (k - #greater) ties
    # by lowest index.
    gt = key > thresh
    n_gt = jnp.sum(gt.astype(jnp.int32), axis=-1, keepdims=True)
    n_tie_drop = k - n_gt                                   # >= 1 per row
    ties = key == thresh

    lane = jax.lax.broadcasted_iota(jnp.int32, (bt, hw), 1)

    # ---- Small binary search for the smallest index cutoff c with
    #      #{i < c : ties[i]} >= n_tie_drop.
    # TODO(synk): could be replaced with a lane-prefix-scan (cumsum) to shave
    # ~log2(hw) serial reductions once its Mosaic lowering is guaranteed.
    lo2_0 = jnp.zeros((bt, 1), jnp.int32)
    hi2_0 = jnp.full((bt, 1), hw, jnp.int32)

    def cut_body(_, carry):
        lo2, hi2 = carry
        mid2 = (lo2 + hi2) >> 1
        cnt2 = jnp.sum((ties & (lane < mid2)).astype(jnp.int32),
                       axis=-1, keepdims=True)
        ok = cnt2 >= n_tie_drop
        hi2 = jnp.where(ok, mid2, hi2)
        lo2 = jnp.where(ok, lo2, mid2 + 1)
        return lo2, hi2

    n_iter2 = max(1, (hw + 1).bit_length())
    _, cut = jax.lax.fori_loop(0, n_iter2, cut_body, (lo2_0, hi2_0))

    drop = gt | (ties & (lane < cut))                       # exactly drop_num
    return jnp.where(drop, 0.0, 1.0).astype(out_dtype)


def _single_pass_kernel(feat_ref, out_ref, *, drop_num):
    # Channel sum straight from the VMEM block (cast fused into the reduce);
    # the feature tile is NOT kept live across the serial search below.
    s = jnp.sum(feat_ref[...], axis=1, dtype=jnp.float32)       # (bt, hw)
    mask = _compute_mask(s, drop_num=drop_num, out_dtype=out_ref.dtype)
    # Re-read the block from VMEM for the multiply (cheap; avoids vreg spills).
    out_ref[...] = feat_ref[...] * mask[:, None, :]


def _two_phase_kernel(feat_ref, out_ref, s_ref, mask_ref, *, drop_num, nc):
    # Grid axis 1 has 2*nc steps: first nc accumulate the channel sum across
    # channel chunks, last nc apply the cached mask to each chunk.
    t = pl.program_id(1)

    @pl.when(t == 0)
    def _():
        s_ref[...] = jnp.zeros_like(s_ref)

    @pl.when(t < nc)
    def _():
        s_ref[...] = s_ref[...] + jnp.sum(feat_ref[...], axis=1,
                                          dtype=jnp.float32)

    @pl.when(t == nc)
    def _():
        mask_ref[...] = _compute_mask(s_ref[...], drop_num=drop_num,
                                      out_dtype=mask_ref.dtype)

    @pl.when(t >= nc)
    def _():
        out_ref[...] = feat_ref[...] * mask_ref[...][:, None, :]


def _pick_tiling(B, C, hw, itemsize):
    """Choose (bt, cc, vmem_limit_bytes) for the current TPU generation."""
    kind = ""
    try:
        kind = jax.devices()[0].device_kind.lower()
    except Exception:
        pass
    multi_tc = "v7" in kind                     # v7x: 2 TensorCores per chip
    vmem_phys = (64 << 20) if multi_tc else (128 << 20)
    usable = vmem_phys - (16 << 20)             # headroom for Mosaic internals
    block_budget = int(usable * 0.75)

    def bufs_bytes(bt_, cc_):
        # double-buffered in + out blocks, plus (bt, hw) sum/mask scratch rows.
        return 4 * bt_ * cc_ * hw * itemsize + bt_ * hw * (4 + itemsize)

    bt = math.gcd(B, 8)
    if multi_tc:
        # >= 2 grid steps per TensorCore on the parallel batch axis so each
        # core can double-buffer its DMAs against the serial selection search.
        while bt > 1 and (B // bt) < 4:
            bt //= 2
    # (Single-TC v5e/v6e: keep bt = gcd(B, 8); extra grid steps buy nothing.)

    # Prefer shrinking bt (keeps the 1x-HBM-read single-pass kernel) before
    # chunking the channel axis (which costs a 2nd read of the tensor).
    cc = C
    while bufs_bytes(bt, C) > block_budget and bt > 1:
        bt //= 2
    if bufs_bytes(bt, C) > block_budget:
        # Channel chunks must be multiples of 8 (BlockSpec sublane rule) that
        # divide C; fall back to full C if no such divisor exists.
        cands = [d for d in range(8, C, 8) if C % d == 0]
        fitting = [d for d in cands if bufs_bytes(bt, d) <= block_budget]
        if fitting:
            cc = max(fitting)
        elif cands:
            cc = min(cands)

    needed = bufs_bytes(bt, cc)
    vmem_limit = None
    if needed > (12 << 20):      # would exceed v5e's 16 MiB default scoped VMEM
        vmem_limit = int(min(usable, needed + (16 << 20)))
    return bt, cc, vmem_limit


def peak_suppress(features, drop_threshold=0.25, *, _force_tiling=None):
    """features: (B, C, H, W) -> (B, C, H, W), topk spatial peaks zeroed."""
    B, C, H, W = features.shape
    hw = H * W
    drop_num = int(drop_threshold * hw)            # matches int() in the module
    if drop_num <= 0:
        return features                            # nothing to drop: no copy

    x = features.reshape(B, C, hw)
    itemsize = jnp.dtype(features.dtype).itemsize

    if _force_tiling is not None:                  # test hook
        bt, cc = _force_tiling
        vmem_limit = None
    else:
        bt, cc, vmem_limit = _pick_tiling(B, C, hw, itemsize)
    nc = C // cc

    if nc == 1:
        kernel = functools.partial(_single_pass_kernel, drop_num=drop_num)
        out = pl.pallas_call(
            kernel,
            out_shape=jax.ShapeDtypeStruct((B, C, hw), features.dtype),
            grid_spec=pltpu.PrefetchScalarGridSpec(
                num_scalar_prefetch=0,
                grid=(B // bt,),
                in_specs=[pl.BlockSpec((bt, C, hw), lambda b: (b, 0, 0))],
                out_specs=pl.BlockSpec((bt, C, hw), lambda b: (b, 0, 0)),
            ),
            compiler_params=pltpu.CompilerParams(
                dimension_semantics=("parallel",),
                vmem_limit_bytes=vmem_limit),
        )(x)
    else:
        kernel = functools.partial(_two_phase_kernel, drop_num=drop_num, nc=nc)
        out = pl.pallas_call(
            kernel,
            out_shape=jax.ShapeDtypeStruct((B, C, hw), features.dtype),
            grid_spec=pltpu.PrefetchScalarGridSpec(
                num_scalar_prefetch=0,
                grid=(B // bt, 2 * nc),
                # Each channel chunk is visited twice: once to accumulate the
                # channel sum, once to apply the mask.
                in_specs=[pl.BlockSpec((bt, cc, hw),
                                       lambda b, t: (b, t % nc, 0))],
                # Output block stays at chunk 0 during the accumulate phase
                # (never written there) and advances during the apply phase.
                out_specs=pl.BlockSpec((bt, cc, hw),
                                       lambda b, t: (b, jnp.maximum(t - nc, 0), 0)),
                scratch_shapes=[pltpu.VMEM((bt, hw), jnp.float32),
                                pltpu.VMEM((bt, hw), features.dtype)],
            ),
            compiler_params=pltpu.CompilerParams(
                dimension_semantics=("parallel", "arbitrary"),
                vmem_limit_bytes=vmem_limit),
        )(x)

    return out.reshape(B, C, H, W)


def _reference(features, drop_threshold=0.25):
    """Pure-JAX reference mirroring the PyTorch forward."""
    B, C, H, W = features.shape
    hw = H * W
    drop_num = int(drop_threshold * hw)
    s = features.sum(axis=1).reshape(B, hw)
    _, idx = jax.lax.top_k(s, drop_num)
    mask = jnp.ones((B, hw), features.dtype)
    mask = jax.vmap(lambda m, i: m.at[i].set(0.0))(mask, idx)
    return features * mask.reshape(B, 1, H, W)


if __name__ == "__main__":
    key = jax.random.PRNGKey(0)

    # Case 1: lane-aligned spatial size (16*16 = 256), single-pass kernel.
    B, C, H, W = 2, 4, 16, 16
    x = jax.random.normal(key, (B, C, H, W), dtype=jnp.float32)
    out = jax.block_until_ready(peak_suppress(x, drop_threshold=0.25))
    ref = _reference(x, drop_threshold=0.25)
    assert out.shape == (B, C, H, W)
    # Continuous random inputs => no ties => must match topk reference exactly.
    assert jnp.allclose(out, ref, atol=1e-6), "mismatch vs reference (16x16)"

    # Case 2: non-128-multiple spatial size (14*14 = 196): unpadded block with
    # masked tail stores (no wrapper pad/slice copies).
    key2 = jax.random.fold_in(key, 1)
    x2 = jax.random.normal(key2, (3, 6, 14, 14), dtype=jnp.float32)
    out2 = jax.block_until_ready(peak_suppress(x2, drop_threshold=0.25))
    ref2 = _reference(x2, drop_threshold=0.25)
    assert out2.shape == (3, 6, 14, 14)
    assert jnp.allclose(out2, ref2, atol=1e-6), "mismatch vs reference (14x14)"

    # Case 3: forced channel tiling exercises the two-phase kernel path.
    key3 = jax.random.fold_in(key, 2)
    x3 = jax.random.normal(key3, (2, 16, 16, 16), dtype=jnp.float32)
    out3 = jax.block_until_ready(
        peak_suppress(x3, drop_threshold=0.25, _force_tiling=(2, 8)))
    ref3 = _reference(x3, drop_threshold=0.25)
    assert out3.shape == (2, 16, 16, 16)
    assert jnp.allclose(out3, ref3, atol=1e-6), "mismatch vs reference (tiled)"

    print("KERNEL_OK")
</pallas_src>

<mosaic_0001>
module attributes {stable_mosaic.version = 11 : i64} {
  func.func @_single_pass_kernel(%arg0: i32, %arg1: memref<2x4x256xf32, #tpu.memory_space<vmem>>, %arg2: memref<2x4x256xf32, #tpu.memory_space<vmem>>) attributes {dimension_semantics = [#tpu.dimension_semantics<parallel>], iteration_bounds = array<i64: 1>, scalar_prefetch = 0 : i64, scratch_operands = 0 : i64, tpu.core_type = #tpu.core_type<tc>, window_params = [{transform_indices = @transform_0, window_bounds = array<i64: 2, 4, 256>}, {transform_indices = @transform_1, window_bounds = array<i64: 2, 4, 256>}]} {
    %c0 = arith.constant 0 : index
    %c0_0 = arith.constant 0 : index
    %c0_1 = arith.constant 0 : index
    %0 = vector.load %arg1[%c0, %c0_0, %c0_1] : memref<2x4x256xf32, #tpu.memory_space<vmem>>, vector<2x4x256xf32>
    %cst = arith.constant dense<0.000000e+00> : vector<2x256xf32>
    %1 = vector.multi_reduction <add>, %0, %cst [1] : vector<2x4x256xf32> to vector<2x256xf32>
    %2 = tpu.bitcast %1 : vector<2x256xf32> -> vector<2x256xi32>
    %c0_i32 = arith.constant 0 : i32
    %3 = vector.broadcast %c0_i32 : i32 to vector<2x256xi32>
    %4 = arith.cmpi slt, %2, %3 : vector<2x256xi32>
    %c2147483647_i32 = arith.constant 2147483647 : i32
    %5 = vector.broadcast %c2147483647_i32 : i32 to vector<2x256xi32>
    %6 = arith.xori %2, %5 : vector<2x256xi32>
    %7 = arith.select %4, %6, %2 : vector<2x256xi1>, vector<2x256xi32>
    %c-2147483648_i32 = arith.constant -2147483648 : i32
    %8 = vector.broadcast %c-2147483648_i32 : i32 to vector<2x1xi32>
    %c2147483647_i32_2 = arith.constant 2147483647 : i32
    %9 = vector.broadcast %c2147483647_i32_2 : i32 to vector<2x1xi32>
    %c64_i32 = arith.constant 64 : i32
    %c0_i32_3 = arith.constant 0 : i32
    %c32_i32 = arith.constant 32 : i32
    %10 = arith.addi %c0_i32_3, %c32_i32 : i32
    %c1_i32 = arith.constant 1 : i32
    %11:2 = scf.for %arg3 = %c0_i32_3 to %10 step %c1_i32 iter_args(%arg4 = %8, %arg5 = %9) -> (vector<2x1xi32>, vector<2x1xi32>)  : i32 {
      %c1_i32_17 = arith.constant 1 : i32
      %38 = vector.broadcast %c1_i32_17 : i32 to vector<2x1xi32>
      %39 = arith.shrsi %arg4, %38 : vector<2x1xi32>
      %c1_i32_18 = arith.constant 1 : i32
      %40 = vector.broadcast %c1_i32_18 : i32 to vector<2x1xi32>
      %41 = arith.shrsi %arg5, %40 : vector<2x1xi32>
      %42 = arith.addi %39, %41 : vector<2x1xi32>
      %43 = arith.andi %arg4, %arg5 : vector<2x1xi32>
      %c1_i32_19 = arith.constant 1 : i32
      %44 = vector.broadcast %c1_i32_19 : i32 to vector<2x1xi32>
      %45 = arith.andi %43, %44 : vector<2x1xi32>
      %46 = arith.addi %42, %45 : vector<2x1xi32>
      %47 = vector.broadcast %46 : vector<2x1xi32> to vector<2x256xi32>
      %48 = arith.cmpi sgt, %7, %47 : vector<2x256xi32>
      %49 = arith.extui %48 : vector<2x256xi1> to vector<2x256xi32>
      %cst_20 = arith.constant dense<0> : vector<2xi32>
      %50 = vector.multi_reduction <add>, %49, %cst_20 [1] : vector<2x256xi32> to vector<2xi32>
      %51 = vector.shape_cast %50 : vector<2xi32> to vector<2x1xi32>
      %52 = vector.broadcast %c64_i32 : i32 to vector<2x1xi32>
      %53 = arith.cmpi sge, %51, %52 : vector<2x1xi32>
      %c1_i32_21 = arith.constant 1 : i32
      %54 = vector.broadcast %c1_i32_21 : i32 to vector<2x1xi32>
      %55 = arith.addi %46, %54 : vector<2x1xi32>
      %56 = arith.select %53, %55, %arg4 : vector<2x1xi1>, vector<2x1xi32>
      %57 = arith.select %53, %arg5, %46 : vector<2x1xi1>, vector<2x1xi32>
      scf.yield %56, %57 : vector<2x1xi32>, vector<2x1xi32>
    }
    %12 = vector.broadcast %11#1 : vector<2x1xi32> to vector<2x256xi32>
    %13 = arith.cmpi sgt, %7, %12 : vector<2x256xi32>
    %14 = arith.extui %13 : vector<2x256xi1> to vector<2x256xi32>
    %cst_4 = arith.constant dense<0> : vector<2xi32>
    %15 = vector.multi_reduction <add>, %14, %cst_4 [1] : vector<2x256xi32> to vector<2xi32>
    %16 = vector.shape_cast %15 : vector<2xi32> to vector<2x1xi32>
    %c64_i32_5 = arith.constant 64 : i32
    %17 = vector.broadcast %c64_i32_5 : i32 to vector<2x1xi32>
    %18 = arith.subi %17, %16 : vector<2x1xi32>
    %19 = vector.broadcast %11#1 : vector<2x1xi32> to vector<2x256xi32>
    %20 = arith.cmpi eq, %7, %19 : vector<2x256xi32>
    %21 = tpu.iota {dimensions = array<i32: 1>} : vector<2x256xi32>
    %c0_i32_6 = arith.constant 0 : i32
    %22 = vector.broadcast %c0_i32_6 : i32 to vector<2x1xi32>
    %c256_i32 = arith.constant 256 : i32
    %23 = vector.broadcast %c256_i32 : i32 to vector<2x1xi32>
    %c0_i32_7 = arith.constant 0 : i32
    %c9_i32 = arith.constant 9 : i32
    %24 = arith.addi %c0_i32_7, %c9_i32 : i32
    %c1_i32_8 = arith.constant 1 : i32
    %25:2 = scf.for %arg3 = %c0_i32_7 to %24 step %c1_i32_8 iter_args(%arg4 = %22, %arg5 = %23) -> (vector<2x1xi32>, vector<2x1xi32>)  : i32 {
      %38 = arith.addi %arg4, %arg5 : vector<2x1xi32>
      %c1_i32_17 = arith.constant 1 : i32
      %39 = vector.broadcast %c1_i32_17 : i32 to vector<2x1xi32>
      %40 = arith.shrsi %38, %39 : vector<2x1xi32>
      %41 = vector.broadcast %40 : vector<2x1xi32> to vector<2x256xi32>
      %42 = arith.cmpi slt, %21, %41 : vector<2x256xi32>
      %43 = arith.andi %20, %42 : vector<2x256xi1>
      %44 = arith.extui %43 : vector<2x256xi1> to vector<2x256xi32>
      %cst_18 = arith.constant dense<0> : vector<2xi32>
      %45 = vector.multi_reduction <add>, %44, %cst_18 [1] : vector<2x256xi32> to vector<2xi32>
      %46 = vector.shape_cast %45 : vector<2xi32> to vector<2x1xi32>
      %47 = arith.cmpi sge, %46, %18 : vector<2x1xi32>
      %48 = arith.select %47, %40, %arg5 : vector<2x1xi1>, vector<2x1xi32>
      %c1_i32_19 = arith.constant 1 : i32
      %49 = vector.broadcast %c1_i32_19 : i32 to vector<2x1xi32>
      %50 = arith.addi %40, %49 : vector<2x1xi32>
      %51 = arith.select %47, %arg4, %50 : vector<2x1xi1>, vector<2x1xi32>
      scf.yield %51, %48 : vector<2x1xi32>, vector<2x1xi32>
    }
    %26 = vector.broadcast %25#1 : vector<2x1xi32> to vector<2x256xi32>
    %27 = arith.cmpi slt, %21, %26 : vector<2x256xi32>
    %28 = arith.andi %20, %27 : vector<2x256xi1>
    %29 = arith.ori %13, %28 : vector<2x256xi1>
    %cst_9 = arith.constant 0.000000e+00 : f32
    %cst_10 = arith.constant 1.000000e+00 : f32
    %30 = vector.broadcast %cst_9 : f32 to vector<2x256xf32>
    %31 = vector.broadcast %cst_10 : f32 to vector<2x256xf32>
    %32 = arith.select %29, %30, %31 : vector<2x256xi1>, vector<2x256xf32>
    %c0_11 = arith.constant 0 : index
    %c0_12 = arith.constant 0 : index
    %c0_13 = arith.constant 0 : index
    %33 = vector.load %arg1[%c0_11, %c0_12, %c0_13] : memref<2x4x256xf32, #tpu.memory_space<vmem>>, vector<2x4x256xf32>
    %34 = vector.shape_cast %32 : vector<2x256xf32> to vector<2x1x256xf32>
    %35 = vector.broadcast %34 : vector<2x1x256xf32> to vector<2x4x256xf32>
    %36 = arith.mulf %33, %35 : vector<2x4x256xf32>
    %c0_14 = arith.constant 0 : index
    %c0_15 = arith.constant 0 : index
    %c0_16 = arith.constant 0 : index
    %37 = vector.load %arg2[%c0_14, %c0_15, %c0_16] : memref<2x4x256xf32, #tpu.memory_space<vmem>>, vector<2x4x256xf32>
    tpu.vector_store %arg2[%c0_14, %c0_15, %c0_16], %36 {strides = array<i32>} : memref<2x4x256xf32, #tpu.memory_space<vmem>>, vector<2x4x256xf32>,
    return
  }
  func.func @transform_0(%arg0: i32) -> (i32, i32, i32) {
    %c0_i32 = arith.constant 0 : i32
    %c0_i32_0 = arith.constant 0 : i32
    %c0_i32_1 = arith.constant 0 : i32
    return %arg0, %c0_i32, %c0_i32_0 : i32, i32, i32
  }
  func.func @transform_1(%arg0: i32) -> (i32, i32, i32) {
    %c0_i32 = arith.constant 0 : i32
    %c0_i32_0 = arith.constant 0 : i32
    %c0_i32_1 = arith.constant 0 : i32
    return %arg0, %c0_i32, %c0_i32_0 : i32, i32, i32
  }
}

</mosaic_0001>

<llo_original>
// kernel: tpu_custom_call.1
$region0: #{tpu_custom_call.1}
  #allocation0 [shape = 'u32[]', space=smem, size = 0x4, offset = 0x4, fixed_abs, tag = 'smem constant byte address 0x4 - core index']
  #allocation1 [shape = 'u32[72,128]{1,0:T(1,128)}', space=vmem, size = 0x9000, scoped, tag = 'internal scratch']
  %s0 = inlined_call_operand.hbm [shape: f32[2,4,256], index: 0, kind: input, shape index: {}]
  %s1 = inlined_call_operand.hbm [shape: f32[2,4,256], index: 1, kind: output, shape index: {}]
  %s2 = sld [smem:[#allocation0]]
  $region32: #{tpu_custom_call.1} parent=0
    _
  %s4 = ssub.s32 1, %s2
  %s5 = scalar_select 0, %s4, %s2
  $region1: #{tpu_custom_call.1} parent=0
    #allocation2 [shape = 'u8[8192]{0}', space=vmem, size = 0x2000, scoped, tag = 'input window, operand 0, single buffered']
    #allocation3 [shape = 's32[1]{0}', space=sflag, size = 0x4, scoped, tag = 'scoped memory for tpu_custom_call.1']
    #allocation4 [shape = 's32[1]{0}', space=sflag, size = 0x4, scoped, tag = 'scoped memory for tpu_custom_call.1']
    #allocation5 [shape = 'u8[8192]{0}', space=vmem, size = 0x2000, scoped, tag = 'output window, operand 0, single buffered']
    %6 = vsyncpa [#allocation3], 0
    %7 = vsyncpa [#allocation4], 0
    // Predicated region
    $region2: #{tpu_custom_call.1} parent=1 // pred_check
      _
    $region3: #{tpu_custom_call.1} parent=1 // pred_check_branch
      %9 = sbr.rel (0) target = $region5
    $region4: #{tpu_custom_call.1} parent=1 // pred_region
      %11 = vsyncadd [#allocation3], 0
      %s12 = sshll.u32 %s0, 4
      %s13 = int_to_ptr.hbm [resolvable:$true] %s12
      %s14 = sshll.u32 [#allocation2], 4
      %s15 = int_to_ptr.vmem [resolvable:$true] %s14
      %20 = dma.hbm_to_vmem [thread:$0]  %s13, 256, %s15, [#allocation3], 128, 128, 8
    $region5: #{tpu_custom_call.1} parent=1 // pred_fallthru
      _
    // Predicated region
    $region6: #{tpu_custom_call.1} parent=1 // pred_check
      _
    $region7: #{tpu_custom_call.1} parent=1 // pred_check_branch
      %22 = sbr.rel (0) target = $region9
    $region8: #{tpu_custom_call.1} parent=1 // pred_region
      %24 = dma.done [#allocation3], 256
    $region9: #{tpu_custom_call.1} parent=1 // pred_fallthru
      _
    %v25 = vld [vmem:[#allocation2] sm:$0xff]
    %v26 = vld [vmem:[#allocation2 + $0x8] sm:$0xff]
    %29 = vst [vmem:[#allocation1] ss:$2 sm:$0xff] %v25
    %v30 = vld.sshfl [vmem:[#allocation1] sm:$0xff pattern:$0x75316420]
    %v31 = vld.sshfl [vmem:[#allocation1 + $0x8] sm:$0xff pattern:$0x75316420]
    %s32 = scalar_lea.vmem [#allocation1], 16
    %33 = vst [vmem:[%s32] ss:$2 sm:$0xff] %v26
    %v34 = vld.sshfl [vmem:[#allocation1 + $0x10] sm:$0xff pattern:$0x75316420]
    %v35 = vld.sshfl [vmem:[#allocation1 + $0x18] sm:$0xff pattern:$0x75316420]
    %vm40 = vcmask 1043456
    %v41 = vsel %vm40, %v30, 0.0
    %v42 = vrot.slane %v41, 4
    %v43 = vadd.f32 %v41, %v42
    %v44 = vrot.slane %v43, 2
    %v45 = vadd.f32 %v43, %v44
    %v46 = vrot.slane %v45, 1
    %v47 = vadd.f32 %v45, %v46
    %v48 = vsel %vm40, %v31, 0.0
    %v49 = vrot.slane %v48, 4
    %v50 = vadd.f32 %v48, %v49
    %v51 = vrot.slane %v50, 2
    %v52 = vadd.f32 %v50, %v51
    %v53 = vrot.slane %v52, 1
    %v54 = vadd.f32 %v52, %v53
    %v55 = vsel %vm40, %v34, 0.0
    %v56 = vrot.slane %v55, 4
    %v57 = vadd.f32 %v55, %v56
    %v58 = vrot.slane %v57, 2
    %v59 = vadd.f32 %v57, %v58
    %v60 = vrot.slane %v59, 1
    %v61 = vadd.f32 %v59, %v60
    %v62 = vsel %vm40, %v35, 0.0
    %v63 = vrot.slane %v62, 4
    %v64 = vadd.f32 %v62, %v63
    %v65 = vrot.slane %v64, 2
    %v66 = vadd.f32 %v64, %v65
    %v67 = vrot.slane %v66, 1
    %v68 = vadd.f32 %v66, %v67
    %vm73 = vcmp.lt.s32.totalorder %v47, 0
    %vm74 = vcmp.lt.s32.totalorder %v54, 0
    %vm75 = vcmp.lt.s32.totalorder %v61, 0
    %vm76 = vcmp.lt.s32.totalorder %v68, 0
    %v77 = vxor.u32 %v47, 2147483647
    %v78 = vxor.u32 %v54, 2147483647
    %v79 = vxor.u32 %v61, 2147483647
    %v80 = vxor.u32 %v68, 2147483647
    %v81 = vsel %vm73, %v77, %v47
    %v82 = vsel %vm74, %v78, %v54
    %v83 = vsel %vm75, %v79, %v61
    %v84 = vsel %vm76, %v80, %v68
    loop: start=0, step=1, limit=32
    $region10: #{tpu_custom_call.1} parent=1 // loop_pre_header
      _
    $region11: #{tpu_custom_call.1} parent=1 // loop_header
      %s86 = sphi 0, %s90
      %p87 = scmp.ge.s32.totalorder %s86, 32
      %v91 = vphi 2147483648, %v131
      %v92 = vphi 2147483647, %v132
    $region12: #{tpu_custom_call.1} parent=1 // loop_header_branch
      %89 = sbr.rel (%p87) target = $region16
    $region13: #{tpu_custom_call.1} parent=1 // loop_body
      %v93 = vshra.s32 %v91, 1
      %v94 = vshra.s32 %v92, 1
      %v95 = vadd.s32 %v93, %v94
      %v96 = vand.u32 %v91, %v92
      %v97 = vand.u32 %v96, 1
      %v98 = vadd.s32 %v95, %v97
      %v99 = vrot.slane %v98, 1
      %vm100 = vcmp.gt.s32.totalorder %v81, %v98
      %vm101 = vcmp.gt.s32.totalorder %v82, %v98
      %vm102 = vcmp.gt.s32.totalorder %v83, %v99
      %vm103 = vcmp.gt.s32.totalorder %v84, %v99
      %v104 = vsel %vm100, 1, 0
      %v105 = vsel %vm101, 1, 0
      %v106 = vsel %vm102, 1, 0
      %v107 = vsel %vm103, 1, 0
      %v108 = vrot.slane %v106, 7
      %vm109 = vcmask 1041409
      %v110 = vsel %vm109, %v108, %v104
      %v111 = vrot.slane %v107, 7
      %v112 = vsel %vm109, %v111, %v105
      %vm113 = vcmask 1041408
      %v114 = vsel %vm113, %v110, 0
      %v115 = vsel %vm113, %v112, 0
      %v116 = vadd.s32 %v114, %v115
      %v117 = vand.u32 %v116, 65535
      %v118 = vshrl.u32 %v116, 16
      %v119 = vcvt.s32.f32 %v117
      %v120 = vcvt.s32.f32 %v118
      %121 = vadd.xlane.f32.xlu0 %v119
      %v122 = vpop.xlane.xlu0 %121
      %123 = vadd.xlane.f32.xlu0 %v120
      %v124 = vpop.xlane.xlu0 %123
      %v125 = vcvt.f32.s32 %v122
      %v126 = vcvt.f32.s32 %v124
      %v127 = vshll.u32 %v126, 16
      %v128 = vadd.s32 %v127, %v125
      %vm129 = vcmp.ge.s32.totalorder %v128, 64
      %v130 = vadd.s32 %v98, 1
      %v131 = vsel %vm129, %v130, %v91
      %v132 = vsel %vm129, %v92, %v98
    $region14: #{tpu_custom_call.1} parent=1 // loop_footer
      %s90 = sadd.s32 1, %s86
    $region15: #{tpu_custom_call.1} parent=1 // loop_footer_branch
      %85 = sbr.rel target = $region11
    $region16: #{tpu_custom_call.1} parent=1 // loop_exit
      _
    %v133 = vrot.slane %v92, 1
    %vm134 = vcmp.gt.s32.totalorder %v81, %v92
    %vm135 = vcmp.gt.s32.totalorder %v82, %v92
    %vm136 = vcmp.gt.s32.totalorder %v83, %v133
    %vm137 = vcmp.gt.s32.totalorder %v84, %v133
    %v138 = vsel %vm134, 1, 0
    %v139 = vsel %vm135, 1, 0
    %v140 = vsel %vm136, 1, 0
    %v141 = vsel %vm137, 1, 0
    %v142 = vrot.slane %v140, 7
    %vm143 = vcmask 1041409
    %v144 = vsel %vm143, %v142, %v138
    %v145 = vrot.slane %v141, 7
    %v146 = vsel %vm143, %v145, %v139
    %vm147 = vcmask 1041408
    %v148 = vsel %vm147, %v144, 0
    %v149 = vsel %vm147, %v146, 0
    %v150 = vadd.s32 %v148, %v149
    %v151 = vand.u32 %v150, 65535
    %v152 = vshrl.u32 %v150, 16
    %v153 = vcvt.s32.f32 %v151
    %v154 = vcvt.s32.f32 %v152
    %155 = vadd.xlane.f32.xlu0 %v153
    %v156 = vpop.xlane.xlu0 %155
    %157 = vadd.xlane.f32.xlu0 %v154
    %v158 = vpop.xlane.xlu0 %157
    %v159 = vcvt.f32.s32 %v156
    %v160 = vcvt.f32.s32 %v158
    %v161 = vshll.u32 %v160, 16
    %v162 = vadd.s32 %v161, %v159
    %v163 = vsub.s32 64, %v162
    %vm164 = vcmp.eq.s32.totalorder %v81, %v92
    %vm165 = vcmp.eq.s32.totalorder %v82, %v92
    %vm166 = vcmp.eq.s32.totalorder %v83, %v133
    %vm167 = vcmp.eq.s32.totalorder %v84, %v133
    %v168 = vlaneseq
    %v169 = vand.u32 %v168, 127
    %v170 = vadd.s32 %v169, 128
    loop: start=0, step=1, limit=9
    $region17: #{tpu_custom_call.1} parent=1 // loop_pre_header
      _
    $region18: #{tpu_custom_call.1} parent=1 // loop_header
      %s172 = sphi 0, %s176
      %p173 = scmp.ge.s32.totalorder %s172, 9
      %v177 = vphi 0, %v221
      %v178 = vphi 256, %v219
    $region19: #{tpu_custom_call.1} parent=1 // loop_header_branch
      %175 = sbr.rel (%p173) target = $region23
    $region20: #{tpu_custom_call.1} parent=1 // loop_body
      %v179 = vadd.s32 %v177, %v178
      %v180 = vshra.s32 %v179, 1
      %vm181 = vcmp.lt.s32.totalorder %v169, %v180
      %vm182 = vcmp.lt.s32.totalorder %v170, %v180
      %v183 = vsel %vm181, 1, 0
      %v184 = vsel %vm182, 1, 0
      %v185 = vrot.slane %v183, 1
      %v186 = vrot.slane %v184, 1
      %vm187 = vcmp.ne.s32.totalorder %v183, 0
      %vm188 = vcmp.ne.s32.totalorder %v184, 0
      %vm189 = vcmp.ne.s32.totalorder %v185, 0
      %vm190 = vcmp.ne.s32.totalorder %v186, 0
      %vm191 = vmand %vm164, %vm187
      %vm192 = vmand %vm165, %vm188
      %vm193 = vmand %vm166, %vm189
      %vm194 = vmand %vm167, %vm190
      %v195 = vsel %vm191, 1, 0
      %v196 = vsel %vm192, 1, 0
      %v197 = vsel %vm193, 1, 0
      %v198 = vsel %vm194, 1, 0
      %v199 = vrot.slane %v197, 7
      %v200 = vsel %vm143, %v199, %v195
      %v201 = vrot.slane %v198, 7
      %v202 = vsel %vm143, %v201, %v196
      %v203 = vsel %vm147, %v200, 0
      %v204 = vsel %vm147, %v202, 0
      %v205 = vadd.s32 %v203, %v204
      %v206 = vand.u32 %v205, 65535
      %v207 = vshrl.u32 %v205, 16
      %v208 = vcvt.s32.f32 %v206
      %v209 = vcvt.s32.f32 %v207
      %210 = vadd.xlane.f32.xlu0 %v208
      %v211 = vpop.xlane.xlu0 %210
      %212 = vadd.xlane.f32.xlu0 %v209
      %v213 = vpop.xlane.xlu0 %212
      %v214 = vcvt.f32.s32 %v211
      %v215 = vcvt.f32.s32 %v213
      %v216 = vshll.u32 %v215, 16
      %v217 = vadd.s32 %v216, %v214
      %vm218 = vcmp.ge.s32.totalorder %v217, %v163
      %v219 = vsel %vm218, %v180, %v178
      %v220 = vadd.s32 %v180, 1
      %v221 = vsel %vm218, %v177, %v220
    $region21: #{tpu_custom_call.1} parent=1 // loop_footer
      %s176 = sadd.s32 1, %s172
    $region22: #{tpu_custom_call.1} parent=1 // loop_footer_branch
      %171 = sbr.rel target = $region18
    $region23: #{tpu_custom_call.1} parent=1 // loop_exit
      _
    %vm222 = vcmp.lt.s32.totalorder %v169, %v178
    %vm223 = vcmp.lt.s32.totalorder %v170, %v178
    %v224 = vsel %vm222, 1, 0
    %v225 = vsel %vm223, 1, 0
    %v226 = vrot.slane %v224, 1
    %v227 = vrot.slane %v225, 1
    %vm228 = vcmp.ne.s32.totalorder %v224, 0
    %vm229 = vcmp.ne.s32.totalorder %v225, 0
    %vm230 = vcmp.ne.s32.totalorder %v226, 0
    %vm231 = vcmp.ne.s32.totalorder %v227, 0
    %vm232 = vmand %vm164, %vm228
    %vm233 = vmand %vm165, %vm229
    %vm234 = vmand %vm166, %vm230
    %vm235 = vmand %vm167, %vm231
    %vm236 = vmor %vm134, %vm232
    %vm237 = vmor %vm135, %vm233
    %vm238 = vmor %vm136, %vm234
    %vm239 = vmor %vm137, %vm235
    %v240 = vsel %vm236, 0.0, 1.0
    %v241 = vsel %vm237, 0.0, 1.0
    %v242 = vsel %vm238, 0.0, 1.0
    %v243 = vsel %vm239, 0.0, 1.0
    %v244 = vperm.slane %v240, 0
    %v245 = vperm.slane %v241, 0
    %v246 = vperm.slane %v242, 0
    %v247 = vperm.slane %v243, 0
    %v252 = vrot.slane %v245, 4
    %v253 = vrot.slane %v247, 4
    %v254 = vsel %vm40, %v244, %v252
    %v255 = vsel %vm40, %v246, %v253
    %v258 = vmul.f32 %v25, %v254
    %v259 = vmul.f32 %v26, %v255
    %260 = vst [vmem:[#allocation5] sm:$0xff] %v258
    %261 = vst [vmem:[#allocation5 + $0x8] sm:$0xff] %v259
    // Predicated region
    $region24: #{tpu_custom_call.1} parent=1 // pred_check
      _
    $region25: #{tpu_custom_call.1} parent=1 // pred_check_branch
      %263 = sbr.rel (0) target = $region27
    $region26: #{tpu_custom_call.1} parent=1 // pred_region
      %265 = vsyncadd [#allocation4], 0
      %s266 = sshll.u32 [#allocation5], 4
      %s267 = int_to_ptr.vmem [resolvable:$true] %s266
      %s268 = sshll.u32 %s1, 4
      %s269 = int_to_ptr.hbm [resolvable:$true] %s268
      %274 = dma.vmem_to_hbm [thread:$0]  %s267, 256, %s269, [#allocation4], 128, 128, 8
    $region27: #{tpu_custom_call.1} parent=1 // pred_fallthru
      _
    // Predicated region
    $region28: #{tpu_custom_call.1} parent=1 // pred_check
      _
    $region29: #{tpu_custom_call.1} parent=1 // pred_check_branch
      %276 = sbr.rel (0) target = $region31
    $region30: #{tpu_custom_call.1} parent=1 // pred_region
      %278 = dma.done [#allocation4], 256
    $region31: #{tpu_custom_call.1} parent=1 // pred_fallthru
      _
    %279 = vsyncpa [#allocation3], 1
    %280 = vsyncpa [#allocation4], 1

</llo_original>
